<compile_context>
chip_gen: v6e
topology: v6e:2x2x1
jax: 0.10.0
libtpu: 0.0.40
codegen_flags: <defaults>
</compile_context>

<pallas_src>
import functools
import math

import jax
import jax.numpy as jnp
from jax.experimental import pallas as pl
from jax.experimental.pallas import tpu as pltpu


def _round_up(x, m):
    return (x + m - 1) // m * m


def _gp_kernel(alpha_ref, real_ref, noise_ref, w1_ref, gram_ref, out_ref, *,
               n_valid, tile_n):
    """One batch tile of the gradient penalty.

    alpha_ref : (n_pad, 1)     f32   per-sample alpha (resident, sliced per tile)
    real_ref  : (TN, Dp)       bf16  flattened real-data tile
    noise_ref : (TN, Dp)       bf16  flattened fixed-noise tile
    w1_ref    : (Dp, Hp)       bf16  discriminator layer-1 weight (resident)
    gram_ref  : (Hp, Hp)       f32   (w2^T w2) * (W1^T W1)        (resident)
    out_ref   : (1, 8, 128)    f32   lane-dense per-tile partial penalty sum
    """
    i = pl.program_id(0)

    # Per-tile alpha slice from the resident buffer (no per-step tiny DMA).
    start = pl.multiple_of(i * tile_n, tile_n)
    alpha = alpha_ref[pl.ds(start, tile_n), :]                       # (TN, 1) f32

    # Distributed matmul: interpolate in hidden space instead of input space.
    h_real = jnp.dot(real_ref[...], w1_ref[...],
                     preferred_element_type=jnp.float32)             # (TN, Hp)
    h_noise = jnp.dot(noise_ref[...], w1_ref[...],
                      preferred_element_type=jnp.float32)            # (TN, Hp)
    h = alpha * h_real + (1.0 - alpha) * h_noise                     # (TN, Hp) f32

    # ||grad||^2 via the w2-folded Gram matrix:
    #   grad = (1[h>0] * w2) @ W1^T  =>  ||grad||^2 = row_sum((m @ G') * m).
    m = (h > 0.0).astype(jnp.float32)                                # (TN, Hp) 0/1
    q = jnp.dot(m, gram_ref[...], preferred_element_type=jnp.float32)
    sq = jnp.maximum(jnp.sum(q * m, axis=1, keepdims=True), 0.0)     # (TN, 1)
    pen = (jnp.sqrt(sq) - 1.0) ** 2                                  # (TN, 1)

    # Mask batch-padding rows (they would otherwise contribute (0-1)^2 = 1).
    row = jax.lax.broadcasted_iota(jnp.int32, pen.shape, 0) + i * tile_n
    pen = jnp.where(row < n_valid, pen, 0.0)

    # Lane-dense per-tile partial sum (one full vreg, unmasked store).  The
    # final mean is reduced outside the kernel, so the batch axis stays
    # "parallel" and shards across both TensorCores on v7x.
    out_ref[...] = jnp.full(out_ref.shape, jnp.sum(pen), dtype=jnp.float32)


def gradient_penalty(real_data, fixed_noise, alpha, w1, w2, *, tile_n=512,
                     vmem_limit_bytes=None):
    """Gradient penalty for the fixed 2-layer ReLU MLP discriminator.

    real_data, fixed_noise : (N, C, H, W)
    alpha                  : (N, 1)   (torch.randn(N,1,1,1) in the module)
    w1                     : (D, HID) with D = C*H*W
    w2                     : (1, HID)
    """
    n = real_data.shape[0]
    d = math.prod(real_data.shape[1:])
    hid = w1.shape[1]

    # Lane/sublane-aligned padded sizes.  Padded W1 columns / Gram rows are
    # zero (contribute nothing); padded batch rows are masked in the kernel
    # and the mean divides by the true N.
    d_pad = _round_up(d, 128)
    hid_pad = _round_up(max(hid, 128), 128)

    # Cap the batch tile so the double-buffered bf16 real+noise tiles stay
    # around <= 24 MiB (safe on v7x's 64 MiB VMEM); align to bf16 sublanes.
    tile_cap = max(16, ((24 << 20) // (8 * d_pad)) // 16 * 16)
    tile_n = min(tile_n, tile_cap)
    tile_n = max(16, _round_up(min(tile_n, _round_up(n, 16)), 16))
    n_pad = _round_up(n, tile_n)
    num_tiles = n_pad // tile_n

    # bf16 data + layer-1 weight: halves HBM traffic and feeds the MXU at its
    # native rate.  All norm/penalty math stays in f32 inside the kernel.
    real_flat = jnp.pad(real_data.reshape(n, d).astype(jnp.bfloat16),
                        ((0, n_pad - n), (0, d_pad - d)))
    noise_flat = jnp.pad(fixed_noise.reshape(n, d).astype(jnp.bfloat16),
                         ((0, n_pad - n), (0, d_pad - d)))
    alpha_p = jnp.pad(alpha.reshape(n, 1).astype(jnp.float32),
                      ((0, n_pad - n), (0, 0)))
    w1_p = jnp.pad(w1.astype(jnp.bfloat16),
                   ((0, d_pad - d), (0, hid_pad - hid)))
    w2_p = jnp.pad(w2.reshape(1, hid).astype(jnp.float32),
                   ((0, 0), (0, hid_pad - hid)))

    # w2-folded Gram matrix G' = (w2^T w2) * (W1^T W1), computed ONCE outside
    # the kernel in full f32 precision.
    w1f = w1_p.astype(jnp.float32)
    gram = jnp.dot(w1f.T, w1f, precision=jax.lax.Precision.HIGHEST)
    gram = gram * (w2_p.T * w2_p)

    if vmem_limit_bytes is None:
        est = (4 * tile_n * d_pad * 2             # real+noise, double-buffered bf16
               + d_pad * hid_pad * 2              # resident W1 (single buffer)
               + hid_pad * hid_pad * 4            # resident Gram'
               + _round_up(n_pad, 8) * 128 * 4    # resident alpha (lane-padded)
               + 8 * tile_n * hid_pad * 4)        # (TN, Hp) f32 intermediates
        vmem_limit_bytes = min(max(est + (8 << 20), 32 << 20), 64 << 20)

    # TODO(synk): for very large D (~100K+), add a second "arbitrary" grid axis
    # over D (tile W1 + real/noise along D, accumulate h in a (tile_n, hid_pad)
    # f32 scratch, run the Gram/penalty epilogue at the last D step).
    kernel = functools.partial(_gp_kernel, n_valid=n, tile_n=tile_n)

    part_sums = pl.pallas_call(
        kernel,
        out_shape=jax.ShapeDtypeStruct((num_tiles, 8, 128), jnp.float32),
        grid_spec=pltpu.PrefetchScalarGridSpec(
            num_scalar_prefetch=0,
            grid=(num_tiles,),
            in_specs=[
                pl.BlockSpec((n_pad, 1), lambda i: (0, 0),
                             pipeline_mode=pl.Buffered(1)),            # alpha
                pl.BlockSpec((tile_n, d_pad), lambda i: (i, 0)),        # real
                pl.BlockSpec((tile_n, d_pad), lambda i: (i, 0)),        # noise
                pl.BlockSpec((d_pad, hid_pad), lambda i: (0, 0),
                             pipeline_mode=pl.Buffered(1)),             # W1
                pl.BlockSpec((hid_pad, hid_pad), lambda i: (0, 0),
                             pipeline_mode=pl.Buffered(1)),             # Gram'
            ],
            out_specs=pl.BlockSpec((1, 8, 128), lambda i: (i, 0, 0)),
        ),
        compiler_params=pltpu.CompilerParams(
            dimension_semantics=("parallel",),
            vmem_limit_bytes=vmem_limit_bytes,
        ),
    )(alpha_p, real_flat, noise_flat, w1_p, gram)

    # Final (tiny) reduction of the per-tile partial sums outside the kernel.
    return jnp.sum(part_sums[:, 0, 0]) * (1.0 / n)


def _reference(real_data, fixed_noise, alpha, w1, w2):
    """Pure-JAX autodiff reference (mirrors the torch.autograd.grad path)."""
    n = real_data.shape[0]
    d = math.prod(real_data.shape[1:])
    real_flat = real_data.reshape(n, d).astype(jnp.float32)
    noise_flat = fixed_noise.reshape(n, d).astype(jnp.float32)
    a = alpha.reshape(n, 1).astype(jnp.float32)
    w1f = w1.astype(jnp.float32)
    w2f = w2.reshape(-1).astype(jnp.float32)

    x = a * real_flat + (1.0 - a) * noise_flat

    def disc_sum(xf):
        h = jnp.dot(xf, w1f, precision=jax.lax.Precision.HIGHEST)
        return jnp.sum(jax.nn.relu(h) @ w2f)

    grads = jax.grad(disc_sum)(x)
    norms = jnp.linalg.norm(grads, axis=1)
    return jnp.mean((norms - 1.0) ** 2)


if __name__ == "__main__":
    key = jax.random.PRNGKey(0)
    k_real, k_noise, k_alpha, k_w1, k_w2 = jax.random.split(key, 5)

    # Small shapes consistent with the module's 4-D (NCHW) inputs.
    N, C, H, W = 2, 4, 16, 16
    D = C * H * W          # 1024 (lane aligned)
    HID = 32               # discriminator hidden width (padded to 128 in-kernel)

    real_data = jax.random.normal(k_real, (N, C, H, W), jnp.float32).astype(jnp.bfloat16)
    fixed_noise = jax.random.normal(k_noise, (N, C, H, W), jnp.float32).astype(jnp.bfloat16)
    # torch.randn(N, 1, 1, 1) -> per-sample standard-normal alpha (host RNG),
    # faithfully matching the module (not the standard uniform(0,1) WGAN-GP).
    alpha = jax.random.normal(k_alpha, (N, 1), jnp.float32)

    # Deterministic synthetic discriminator weights (2-layer ReLU MLP).
    w1 = (jax.random.normal(k_w1, (D, HID), jnp.float32) * 0.05).astype(jnp.bfloat16)
    w2 = jax.random.normal(k_w2, (1, HID), jnp.float32) * 0.1

    gp = jax.block_until_ready(gradient_penalty(real_data, fixed_noise, alpha, w1, w2))
    ref = _reference(real_data, fixed_noise, alpha, w1, w2)
    assert jnp.allclose(gp, ref, rtol=5e-3, atol=1e-3), (gp, ref)

    # Larger batch: exercises multi-tile parallel grid + batch-pad masking.
    k2 = jax.random.split(jax.random.PRNGKey(0), 4)
    N2 = 37
    real2 = jax.random.normal(k2[0], (N2, C, H, W), jnp.float32).astype(jnp.bfloat16)
    noise2 = jax.random.normal(k2[1], (N2, C, H, W), jnp.float32).astype(jnp.bfloat16)
    alpha2 = jax.random.normal(k2[2], (N2, 1), jnp.float32)
    gp2 = jax.block_until_ready(
        gradient_penalty(real2, noise2, alpha2, w1, w2, tile_n=16))
    ref2 = _reference(real2, noise2, alpha2, w1, w2)
    assert jnp.allclose(gp2, ref2, rtol=5e-3, atol=1e-3), (gp2, ref2)

    print("KERNEL_OK")
</pallas_src>

<mosaic_0001>
module attributes {stable_mosaic.version = 11 : i64} {
  func.func @_gp_kernel(%arg0: i32, %arg1: memref<16x1xf32, #tpu.memory_space<vmem>>, %arg2: memref<16x1024xbf16, #tpu.memory_space<vmem>>, %arg3: memref<16x1024xbf16, #tpu.memory_space<vmem>>, %arg4: memref<1024x128xbf16, #tpu.memory_space<vmem>>, %arg5: memref<128x128xf32, #tpu.memory_space<vmem>>, %arg6: memref<1x8x128xf32, #tpu.memory_space<vmem>>) attributes {dimension_semantics = [#tpu.dimension_semantics<parallel>], iteration_bounds = array<i64: 1>, scalar_prefetch = 0 : i64, scratch_operands = 0 : i64, tpu.core_type = #tpu.core_type<tc>, window_params = [{pipeline_mode = #tpu.pipeline_mode<synchronous>, transform_indices = @transform_0, window_bounds = array<i64: 16, 1>}, {transform_indices = @transform_1, window_bounds = array<i64: 16, 1024>}, {transform_indices = @transform_2, window_bounds = array<i64: 16, 1024>}, {pipeline_mode = #tpu.pipeline_mode<synchronous>, transform_indices = @transform_3, window_bounds = array<i64: 1024, 128>}, {pipeline_mode = #tpu.pipeline_mode<synchronous>, transform_indices = @transform_4, window_bounds = array<i64: 128, 128>}, {transform_indices = @transform_5, window_bounds = array<i64: 1, 8, 128>}]} {
    %c16_i32 = arith.constant 16 : i32
    %0 = arith.muli %arg0, %c16_i32 : i32
    %1 = tpu.assume_multiple %0, 16 : i32
    %2 = arith.index_cast %1 : i32 to index
    %c0 = arith.constant 0 : index
    %3 = vector.load %arg1[%2, %c0] : memref<16x1xf32, #tpu.memory_space<vmem>>, vector<16x1xf32>
    %c0_0 = arith.constant 0 : index
    %c0_1 = arith.constant 0 : index
    %4 = vector.load %arg2[%c0_0, %c0_1] : memref<16x1024xbf16, #tpu.memory_space<vmem>>, vector<16x1024xbf16>
    %c0_2 = arith.constant 0 : index
    %c0_3 = arith.constant 0 : index
    %5 = vector.load %arg4[%c0_2, %c0_3] : memref<1024x128xbf16, #tpu.memory_space<vmem>>, vector<1024x128xbf16>
    %cst = arith.constant dense<0.000000e+00> : vector<16x128xf32>
    %6 = tpu.matmul %4, %5, %cst {dimension_numbers = #tpu.dot_dimension_numbers<[1], [0], [0], [1], [0, 0, 1, 1], [], []>} : vector<16x1024xbf16>, vector<1024x128xbf16>, vector<16x128xf32> -> vector<16x128xf32>
    %c0_4 = arith.constant 0 : index
    %c0_5 = arith.constant 0 : index
    %7 = vector.load %arg3[%c0_4, %c0_5] : memref<16x1024xbf16, #tpu.memory_space<vmem>>, vector<16x1024xbf16>
    %c0_6 = arith.constant 0 : index
    %c0_7 = arith.constant 0 : index
    %8 = vector.load %arg4[%c0_6, %c0_7] : memref<1024x128xbf16, #tpu.memory_space<vmem>>, vector<1024x128xbf16>
    %cst_8 = arith.constant dense<0.000000e+00> : vector<16x128xf32>
    %9 = tpu.matmul %7, %8, %cst_8 {dimension_numbers = #tpu.dot_dimension_numbers<[1], [0], [0], [1], [0, 0, 1, 1], [], []>} : vector<16x1024xbf16>, vector<1024x128xbf16>, vector<16x128xf32> -> vector<16x128xf32>
    %10 = vector.broadcast %3 : vector<16x1xf32> to vector<16x128xf32>
    %11 = arith.mulf %10, %6 : vector<16x128xf32>
    %cst_9 = arith.constant 1.000000e+00 : f32
    %12 = vector.broadcast %cst_9 : f32 to vector<16x1xf32>
    %13 = arith.subf %12, %3 : vector<16x1xf32>
    %14 = vector.broadcast %13 : vector<16x1xf32> to vector<16x128xf32>
    %15 = arith.mulf %14, %9 : vector<16x128xf32>
    %16 = arith.addf %11, %15 : vector<16x128xf32>
    %cst_10 = arith.constant 0.000000e+00 : f32
    %17 = vector.broadcast %cst_10 : f32 to vector<16x128xf32>
    %18 = arith.cmpf ogt, %16, %17 : vector<16x128xf32>
    %19 = arith.extui %18 : vector<16x128xi1> to vector<16x128xi32>
    %20 = arith.sitofp %19 : vector<16x128xi32> to vector<16x128xf32>
    %c0_11 = arith.constant 0 : index
    %c0_12 = arith.constant 0 : index
    %21 = vector.load %arg5[%c0_11, %c0_12] : memref<128x128xf32, #tpu.memory_space<vmem>>, vector<128x128xf32>
    %cst_13 = arith.constant dense<0.000000e+00> : vector<16x128xf32>
    %22 = tpu.matmul %20, %21, %cst_13 {dimension_numbers = #tpu.dot_dimension_numbers<[1], [0], [0], [1], [0, 0, 1, 1], [], []>} : vector<16x128xf32>, vector<128x128xf32>, vector<16x128xf32> -> vector<16x128xf32>
    %23 = arith.mulf %22, %20 : vector<16x128xf32>
    %cst_14 = arith.constant dense<0.000000e+00> : vector<16xf32>
    %24 = vector.multi_reduction <add>, %23, %cst_14 [1] : vector<16x128xf32> to vector<16xf32>
    %25 = vector.shape_cast %24 : vector<16xf32> to vector<16x1xf32>
    %cst_15 = arith.constant 0.000000e+00 : f32
    %26 = vector.broadcast %cst_15 : f32 to vector<16x1xf32>
    %27 = arith.maximumf %25, %26 : vector<16x1xf32>
    %28 = math.sqrt %27 : vector<16x1xf32>
    %cst_16 = arith.constant 1.000000e+00 : f32
    %29 = vector.broadcast %cst_16 : f32 to vector<16x1xf32>
    %30 = arith.subf %28, %29 : vector<16x1xf32>
    %31 = arith.mulf %30, %30 : vector<16x1xf32>
    %32 = tpu.iota {dimensions = array<i32: 0>} : vector<16x1xi32>
    %c16_i32_17 = arith.constant 16 : i32
    %33 = arith.muli %arg0, %c16_i32_17 : i32
    %34 = vector.broadcast %33 : i32 to vector<16x1xi32>
    %35 = arith.addi %32, %34 : vector<16x1xi32>
    %c2_i32 = arith.constant 2 : i32
    %36 = vector.broadcast %c2_i32 : i32 to vector<16x1xi32>
    %37 = arith.cmpi slt, %35, %36 : vector<16x1xi32>
    %cst_18 = arith.constant 0.000000e+00 : f32
    %38 = vector.broadcast %cst_18 : f32 to vector<16x1xf32>
    %39 = arith.select %37, %31, %38 : vector<16x1xi1>, vector<16x1xf32>
    %40 = vector.shape_cast %39 : vector<16x1xf32> to vector<1x16x1xf32>
    %cst_19 = arith.constant dense<0.000000e+00> : vector<1xf32>
    %41 = vector.multi_reduction <add>, %40, %cst_19 [1, 2] : vector<1x16x1xf32> to vector<1xf32>
    %42 = vector.shape_cast %41 : vector<1xf32> to vector<1x1x1xf32>
    %43 = vector.extract %42[0, 0, 0] : f32 from vector<1x1x1xf32>
    %44 = vector.broadcast %43 : f32 to vector<1x8x128xf32>
    %c0_20 = arith.constant 0 : index
    %c0_21 = arith.constant 0 : index
    %c0_22 = arith.constant 0 : index
    %45 = vector.load %arg6[%c0_20, %c0_21, %c0_22] : memref<1x8x128xf32, #tpu.memory_space<vmem>>, vector<1x8x128xf32>
    tpu.vector_store %arg6[%c0_20, %c0_21, %c0_22], %44 {strides = array<i32>} : memref<1x8x128xf32, #tpu.memory_space<vmem>>, vector<1x8x128xf32>,
    return
  }
  func.func @transform_0(%arg0: i32) -> (i32, i32) {
    %c0_i32 = arith.constant 0 : i32
    %c0_i32_0 = arith.constant 0 : i32
    %c0_i32_1 = arith.constant 0 : i32
    return %c0_i32, %c0_i32_0 : i32, i32
  }
  func.func @transform_1(%arg0: i32) -> (i32, i32) {
    %c0_i32 = arith.constant 0 : i32
    %c0_i32_0 = arith.constant 0 : i32
    return %arg0, %c0_i32 : i32, i32
  }
  func.func @transform_2(%arg0: i32) -> (i32, i32) {
    %c0_i32 = arith.constant 0 : i32
    %c0_i32_0 = arith.constant 0 : i32
    return %arg0, %c0_i32 : i32, i32
  }
  func.func @transform_3(%arg0: i32) -> (i32, i32) {
    %c0_i32 = arith.constant 0 : i32
    %c0_i32_0 = arith.constant 0 : i32
    %c0_i32_1 = arith.constant 0 : i32
    return %c0_i32, %c0_i32_0 : i32, i32
  }
  func.func @transform_4(%arg0: i32) -> (i32, i32) {
    %c0_i32 = arith.constant 0 : i32
    %c0_i32_0 = arith.constant 0 : i32
    %c0_i32_1 = arith.constant 0 : i32
    return %c0_i32, %c0_i32_0 : i32, i32
  }
  func.func @transform_5(%arg0: i32) -> (i32, i32, i32) {
    %c0_i32 = arith.constant 0 : i32
    %c0_i32_0 = arith.constant 0 : i32
    %c0_i32_1 = arith.constant 0 : i32
    return %arg0, %c0_i32, %c0_i32_0 : i32, i32, i32
  }
}

</mosaic_0001>

<llo_original>
// kernel: tpu_custom_call.1
$region0: #{tpu_custom_call.1}
  #allocation0 [shape = 'u32[]', space=smem, size = 0x4, offset = 0x4, fixed_abs, tag = 'smem constant byte address 0x4 - core index']
  #allocation1 [shape = 'u32[144,128]{1,0:T(1,128)}', space=vmem, size = 0x12000, scoped, tag = 'internal scratch']
  %s0 = inlined_call_operand.vmem [shape: f32[16,1], index: 0, kind: input, shape index: {}]
  %s1 = inlined_call_operand.hbm [shape: bf16[16,1024], index: 1, kind: input, shape index: {}]
  %s2 = inlined_call_operand.hbm [shape: bf16[16,1024], index: 2, kind: input, shape index: {}]
  %s3 = inlined_call_operand.hbm [shape: bf16[1024,128], index: 3, kind: input, shape index: {}]
  %s4 = inlined_call_operand.hbm [shape: f32[128,128], index: 4, kind: input, shape index: {}]
  %s5 = inlined_call_operand.hbm [shape: f32[1,8,128], index: 5, kind: output, shape index: {}]
  %s6 = sld [smem:[#allocation0]]
  $region46: #{tpu_custom_call.1} parent=0
    _
  %s8 = ssub.s32 1, %s6
  %s9 = scalar_select 0, %s8, %s6
  $region1: #{tpu_custom_call.1} parent=0
    #allocation2 [shape = 'u8[32768]{0}', space=vmem, size = 0x8000, scoped, tag = 'input window, operand 1, single buffered']
    #allocation3 [shape = 's32[1]{0}', space=sflag, size = 0x4, scoped, tag = 'scoped memory for tpu_custom_call.1']
    #allocation4 [shape = 's32[1]{0}', space=sflag, size = 0x4, scoped, tag = 'scoped memory for tpu_custom_call.1']
    #allocation5 [shape = 'u8[32768]{0}', space=vmem, size = 0x8000, scoped, tag = 'input window, operand 2, single buffered']
    #allocation6 [shape = 's32[1]{0}', space=sflag, size = 0x4, scoped, tag = 'scoped memory for tpu_custom_call.1']
    #allocation7 [shape = 'u8[262144]{0}', space=vmem, size = 0x40000, scoped, tag = 'input window, operand 3, single buffered']
    #allocation8 [shape = 'u8[65536]{0}', space=vmem, size = 0x10000, scoped, tag = 'input window, operand 4, single buffered']
    #allocation9 [shape = 's32[1]{0}', space=sflag, size = 0x4, scoped, tag = 'scoped memory for tpu_custom_call.1']
    #allocation10 [shape = 'u8[4096]{0}', space=vmem, size = 0x1000, scoped, tag = 'output window, operand 0, single buffered']
    %10 = vsyncpa [#allocation3], 0
    %11 = vsyncpa [#allocation6], 0
    %12 = vsyncpa [#allocation9], 0
    %13 = vsyncpa [#allocation4], 0
    // Predicated region
    $region2: #{tpu_custom_call.1} parent=1 // pred_check
      _
    $region3: #{tpu_custom_call.1} parent=1 // pred_check_branch
      %15 = sbr.rel (0) target = $region5
    $region4: #{tpu_custom_call.1} parent=1 // pred_region
      _
    $region5: #{tpu_custom_call.1} parent=1 // pred_fallthru
      _
    // Predicated region
    $region6: #{tpu_custom_call.1} parent=1 // pred_check
      _
    $region7: #{tpu_custom_call.1} parent=1 // pred_check_branch
      %17 = sbr.rel (0) target = $region9
    $region8: #{tpu_custom_call.1} parent=1 // pred_region
      %s19 = ssub.s32 1024, 1024
      %20 = vsyncadd [#allocation3], %s19
      %s21 = sshll.u32 [#allocation2], 4
      %s22 = int_to_ptr.vmem [resolvable:$true] %s21
      %27 = dma.hbm_to_vmem [thread:$0]  %s1, 1024, %s22, [#allocation3], 512, 512, 32
    $region9: #{tpu_custom_call.1} parent=1 // pred_fallthru
      _
    // Predicated region
    $region10: #{tpu_custom_call.1} parent=1 // pred_check
      _
    $region11: #{tpu_custom_call.1} parent=1 // pred_check_branch
      %29 = sbr.rel (0) target = $region13
    $region12: #{tpu_custom_call.1} parent=1 // pred_region
      %s31 = ssub.s32 1024, 1024
      %32 = vsyncadd [#allocation6], %s31
      %s33 = sshll.u32 [#allocation5], 4
      %s34 = int_to_ptr.vmem [resolvable:$true] %s33
      %39 = dma.hbm_to_vmem [thread:$0]  %s2, 1024, %s34, [#allocation6], 512, 512, 32
    $region13: #{tpu_custom_call.1} parent=1 // pred_fallthru
      _
    // Predicated region
    $region14: #{tpu_custom_call.1} parent=1 // pred_check
      _
    $region15: #{tpu_custom_call.1} parent=1 // pred_check_branch
      %41 = sbr.rel (0) target = $region17
    $region16: #{tpu_custom_call.1} parent=1 // pred_region
      %s43 = ssub.s32 8192, 8192
      %44 = vsyncadd [#allocation6], %s43
      %s45 = sshll.u32 [#allocation7], 4
      %s46 = int_to_ptr.vmem [resolvable:$true] %s45
      %51 = dma.hbm_to_vmem [thread:$0]  %s3, 8192, %s46, [#allocation6], 64, 64, 4
    $region17: #{tpu_custom_call.1} parent=1 // pred_fallthru
      _
    // Predicated region
    $region18: #{tpu_custom_call.1} parent=1 // pred_check
      _
    $region19: #{tpu_custom_call.1} parent=1 // pred_check_branch
      %53 = sbr.rel (0) target = $region21
    $region20: #{tpu_custom_call.1} parent=1 // pred_region
      %s55 = ssub.s32 2048, 2048
      %56 = vsyncadd [#allocation9], %s55
      %s57 = sshll.u32 [#allocation8], 4
      %s58 = int_to_ptr.vmem [resolvable:$true] %s57
      %63 = dma.hbm_to_vmem [thread:$0]  %s4, 2048, %s58, [#allocation9], 128, 128, 8
    $region21: #{tpu_custom_call.1} parent=1 // pred_fallthru
      _
    // Predicated region
    $region22: #{tpu_custom_call.1} parent=1 // pred_check
      _
    $region23: #{tpu_custom_call.1} parent=1 // pred_check_branch
      %65 = sbr.rel (0) target = $region25
    $region24: #{tpu_custom_call.1} parent=1 // pred_region
      %66 = dma.done [#allocation3], 1024
    $region25: #{tpu_custom_call.1} parent=1 // pred_fallthru
      _
    // Predicated region
    $region26: #{tpu_custom_call.1} parent=1 // pred_check
      _
    $region27: #{tpu_custom_call.1} parent=1 // pred_check_branch
      %68 = sbr.rel (0) target = $region29
    $region28: #{tpu_custom_call.1} parent=1 // pred_region
      %69 = dma.done [#allocation6], 1024
    $region29: #{tpu_custom_call.1} parent=1 // pred_fallthru
      _
    // Predicated region
    $region30: #{tpu_custom_call.1} parent=1 // pred_check
      _
    $region31: #{tpu_custom_call.1} parent=1 // pred_check_branch
      %71 = sbr.rel (0) target = $region33
    $region32: #{tpu_custom_call.1} parent=1 // pred_region
      %72 = dma.done [#allocation6], 8192
    $region33: #{tpu_custom_call.1} parent=1 // pred_fallthru
      _
    // Predicated region
    $region34: #{tpu_custom_call.1} parent=1 // pred_check
      _
    $region35: #{tpu_custom_call.1} parent=1 // pred_check_branch
      %74 = sbr.rel (0) target = $region37
    $region36: #{tpu_custom_call.1} parent=1 // pred_region
      %75 = dma.done [#allocation9], 2048
    $region37: #{tpu_custom_call.1} parent=1 // pred_fallthru
      _
    %s77 = smul.u32 0, 16
    %s78 = scalar_lea.vmem %s0, %s77
    %v79 = vld [vmem:[%s78] sm:$0xff]
    %v80 = vld [vmem:[%s78 + $0x8] sm:$0xff]
    %v81 = vld [vmem:[#allocation2] sm:$0xff]
    %v82 = vld [vmem:[#allocation2 + $0x8] sm:$0xff]
    %v83 = vld [vmem:[#allocation2 + $0x10] sm:$0xff]
    %v84 = vld [vmem:[#allocation2 + $0x18] sm:$0xff]
    %v85 = vld [vmem:[#allocation2 + $0x20] sm:$0xff]
    %v86 = vld [vmem:[#allocation2 + $0x28] sm:$0xff]
    %v87 = vld [vmem:[#allocation2 + $0x30] sm:$0xff]
    %v88 = vld [vmem:[#allocation2 + $0x38] sm:$0xff]
    %v89 = vld [vmem:[#allocation7] sm:$0xf]
    %v90 = vld [vmem:[#allocation7 + $0x4] sm:$0xf]
    %v91 = vld [vmem:[#allocation7 + $0x8] sm:$0xf]
    %v92 = vld [vmem:[#allocation7 + $0xc] sm:$0xf]
    %v93 = vld [vmem:[#allocation7 + $0x10] sm:$0xf]
    %v94 = vld [vmem:[#allocation7 + $0x14] sm:$0xf]
    %v95 = vld [vmem:[#allocation7 + $0x18] sm:$0xf]
    %v96 = vld [vmem:[#allocation7 + $0x1c] sm:$0xf]
    %v97 = vld [vmem:[#allocation7 + $0x20] sm:$0xf]
    %v98 = vld [vmem:[#allocation7 + $0x24] sm:$0xf]
    %v99 = vld [vmem:[#allocation7 + $0x28] sm:$0xf]
    %v100 = vld [vmem:[#allocation7 + $0x2c] sm:$0xf]
    %v101 = vld [vmem:[#allocation7 + $0x30] sm:$0xf]
    %v102 = vld [vmem:[#allocation7 + $0x34] sm:$0xf]
    %v103 = vld [vmem:[#allocation7 + $0x38] sm:$0xf]
    %v104 = vld [vmem:[#allocation7 + $0x3c] sm:$0xf]
    %v105 = vld [vmem:[#allocation7 + $0x40] sm:$0xf]
    %v106 = vld [vmem:[#allocation7 + $0x44] sm:$0xf]
    %v107 = vld [vmem:[#allocation7 + $0x48] sm:$0xf]
    %v108 = vld [vmem:[#allocation7 + $0x4c] sm:$0xf]
    %v109 = vld [vmem:[#allocation7 + $0x50] sm:$0xf]
    %v110 = vld [vmem:[#allocation7 + $0x54] sm:$0xf]
    %v111 = vld [vmem:[#allocation7 + $0x58] sm:$0xf]
    %v112 = vld [vmem:[#allocation7 + $0x5c] sm:$0xf]
    %v113 = vld [vmem:[#allocation7 + $0x60] sm:$0xf]
    %v114 = vld [vmem:[#allocation7 + $0x64] sm:$0xf]
    %v115 = vld [vmem:[#allocation7 + $0x68] sm:$0xf]
    %v116 = vld [vmem:[#allocation7 + $0x6c] sm:$0xf]
    %v117 = vld [vmem:[#allocation7 + $0x70] sm:$0xf]
    %v118 = vld [vmem:[#allocation7 + $0x74] sm:$0xf]
    %v119 = vld [vmem:[#allocation7 + $0x78] sm:$0xf]
    %v120 = vld [vmem:[#allocation7 + $0x7c] sm:$0xf]
    %v121 = vld [vmem:[#allocation7 + $0x80] sm:$0xf]
    %v122 = vld [vmem:[#allocation7 + $0x84] sm:$0xf]
    %v123 = vld [vmem:[#allocation7 + $0x88] sm:$0xf]
    %v124 = vld [vmem:[#allocation7 + $0x8c] sm:$0xf]
    %v125 = vld [vmem:[#allocation7 + $0x90] sm:$0xf]
    %v126 = vld [vmem:[#allocation7 + $0x94] sm:$0xf]
    %v127 = vld [vmem:[#allocation7 + $0x98] sm:$0xf]
    %v128 = vld [vmem:[#allocation7 + $0x9c] sm:$0xf]
    %v129 = vld [vmem:[#allocation7 + $0xa0] sm:$0xf]
    %v130 = vld [vmem:[#allocation7 + $0xa4] sm:$0xf]
    %v131 = vld [vmem:[#allocation7 + $0xa8] sm:$0xf]
    %v132 = vld [vmem:[#allocation7 + $0xac] sm:$0xf]
    %v133 = vld [vmem:[#allocation7 + $0xb0] sm:$0xf]
    %v134 = vld [vmem:[#allocation7 + $0xb4] sm:$0xf]
    %v135 = vld [vmem:[#allocation7 + $0xb8] sm:$0xf]
    %v136 = vld [vmem:[#allocation7 + $0xbc] sm:$0xf]
    %v137 = vld [vmem:[#allocation7 + $0xc0] sm:$0xf]
    %v138 = vld [vmem:[#allocation7 + $0xc4] sm:$0xf]
    %v139 = vld [vmem:[#allocation7 + $0xc8] sm:$0xf]
    %v140 = vld [vmem:[#allocation7 + $0xcc] sm:$0xf]
    %v141 = vld [vmem:[#allocation7 + $0xd0] sm:$0xf]
    %v142 = vld [vmem:[#allocation7 + $0xd4] sm:$0xf]
    %v143 = vld [vmem:[#allocation7 + $0xd8] sm:$0xf]
    %v144 = vld [vmem:[#allocation7 + $0xdc] sm:$0xf]
    %v145 = vld [vmem:[#allocation7 + $0xe0] sm:$0xf]
    %v146 = vld [vmem:[#allocation7 + $0xe4] sm:$0xf]
    %v147 = vld [vmem:[#allocation7 + $0xe8] sm:$0xf]
    %v148 = vld [vmem:[#allocation7 + $0xec] sm:$0xf]
    %v149 = vld [vmem:[#allocation7 + $0xf0] sm:$0xf]
    %v150 = vld [vmem:[#allocation7 + $0xf4] sm:$0xf]
    %v151 = vld [vmem:[#allocation7 + $0xf8] sm:$0xf]
    %v152 = vld [vmem:[#allocation7 + $0xfc] sm:$0xf]
    %v153 = vld [vmem:[#allocation7 + $0x100] sm:$0xf]
    %v154 = vld [vmem:[#allocation7 + $0x104] sm:$0xf]
    %v155 = vld [vmem:[#allocation7 + $0x108] sm:$0xf]
    %v156 = vld [vmem:[#allocation7 + $0x10c] sm:$0xf]
    %v157 = vld [vmem:[#allocation7 + $0x110] sm:$0xf]
    %v158 = vld [vmem:[#allocation7 + $0x114] sm:$0xf]
    %v159 = vld [vmem:[#allocation7 + $0x118] sm:$0xf]
    %v160 = vld [vmem:[#allocation7 + $0x11c] sm:$0xf]
    %v161 = vld [vmem:[#allocation7 + $0x120] sm:$0xf]
    %v162 = vld [vmem:[#allocation7 + $0x124] sm:$0xf]
    %v163 = vld [vmem:[#allocation7 + $0x128] sm:$0xf]
    %v164 = vld [vmem:[#allocation7 + $0x12c] sm:$0xf]
    %v165 = vld [vmem:[#allocation7 + $0x130] sm:$0xf]
    %v166 = vld [vmem:[#allocation7 + $0x134] sm:$0xf]
    %v167 = vld [vmem:[#allocation7 + $0x138] sm:$0xf]
    %v168 = vld [vmem:[#allocation7 + $0x13c] sm:$0xf]
    %v169 = vld [vmem:[#allocation7 + $0x140] sm:$0xf]
    %v170 = vld [vmem:[#allocation7 + $0x144] sm:$0xf]
    %v171 = vld [vmem:[#allocation7 + $0x148] sm:$0xf]
    %v172 = vld [vmem:[#allocation7 + $0x14c] sm:$0xf]
    %v173 = vld [vmem:[#allocation7 + $0x150] sm:$0xf]
    %v174 = vld [vmem:[#allocation7 + $0x154] sm:$0xf]
    %v175 = vld [vmem:[#allocation7 + $0x158] sm:$0xf]
    %v176 = vld [vmem:[#allocation7 + $0x15c] sm:$0xf]
    %v177 = vld [vmem:[#allocation7 + $0x160] sm:$0xf]
    %v178 = vld [vmem:[#allocation7 + $0x164] sm:$0xf]
    %v179 = vld [vmem:[#allocation7 + $0x168] sm:$0xf]
    %v180 = vld [vmem:[#allocation7 + $0x16c] sm:$0xf]
    %v181 = vld [vmem:[#allocation7 + $0x170] sm:$0xf]
    %v182 = vld [vmem:[#allocation7 + $0x174] sm:$0xf]
    %v183 = vld [vmem:[#allocation7 + $0x178] sm:$0xf]
    %v184 = vld [vmem:[#allocation7 + $0x17c] sm:$0xf]
    %v185 = vld [vmem:[#allocation7 + $0x180] sm:$0xf]
    %v186 = vld [vmem:[#allocation7 + $0x184] sm:$0xf]
    %v187 = vld [vmem:[#allocation7 + $0x188] sm:$0xf]
    %v188 = vld [vmem:[#allocation7 + $0x18c] sm:$0xf]
    %v189 = vld [vmem:[#allocation7 + $0x190] sm:$0xf]
    %v190 = vld [vmem:[#allocation7 + $0x194] sm:$0xf]
    %v191 = vld [vmem:[#allocation7 + $0x198] sm:$0xf]
    %v192 = vld [vmem:[#allocation7 + $0x19c] sm:$0xf]
    %v193 = vld [vmem:[#allocation7 + $0x1a0] sm:$0xf]
    %v194 = vld [vmem:[#allocation7 + $0x1a4] sm:$0xf]
    %v195 = vld [vmem:[#allocation7 + $0x1a8] sm:$0xf]
    %v196 = vld [vmem:[#allocation7 + $0x1ac] sm:$0xf]
    %v197 = vld [vmem:[#allocation7 + $0x1b0] sm:$0xf]
    %v198 = vld [vmem:[#allocation7 + $0x1b4] sm:$0xf]
    %v199 = vld [vmem:[#allocation7 + $0x1b8] sm:$0xf]
    %v200 = vld [vmem:[#allocation7 + $0x1bc] sm:$0xf]
    %v201 = vld [vmem:[#allocation7 + $0x1c0] sm:$0xf]
    %v202 = vld [vmem:[#allocation7 + $0x1c4] sm:$0xf]
    %v203 = vld [vmem:[#allocation7 + $0x1c8] sm:$0xf]
    %v204 = vld [vmem:[#allocation7 + $0x1cc] sm:$0xf]
    %v205 = vld [vmem:[#allocation7 + $0x1d0] sm:$0xf]
    %v206 = vld [vmem:[#allocation7 + $0x1d4] sm:$0xf]
    %v207 = vld [vmem:[#allocation7 + $0x1d8] sm:$0xf]
    %v208 = vld [vmem:[#allocation7 + $0x1dc] sm:$0xf]
    %v209 = vld [vmem:[#allocation7 + $0x1e0] sm:$0xf]
    %v210 = vld [vmem:[#allocation7 + $0x1e4] sm:$0xf]
    %v211 = vld [vmem:[#allocation7 + $0x1e8] sm:$0xf]
    %v212 = vld [vmem:[#allocation7 + $0x1ec] sm:$0xf]
    %v213 = vld [vmem:[#allocation7 + $0x1f0] sm:$0xf]
    %v214 = vld [vmem:[#allocation7 + $0x1f4] sm:$0xf]
    %v215 = vld [vmem:[#allocation7 + $0x1f8] sm:$0xf]
    %v216 = vld [vmem:[#allocation7 + $0x1fc] sm:$0xf]
    %v225 = vunpack.c.l.b16 %v81
    %v226 = vunpack.c.h.b16 %v81
    %v227 = vunpack.c.l.b16 %v82
    %v228 = vunpack.c.h.b16 %v82
    %v229 = vunpack.c.l.b16 %v83
    %v230 = vunpack.c.h.b16 %v83
    %v231 = vunpack.c.l.b16 %v84
    %v232 = vunpack.c.h.b16 %v84
    %v233 = vunpack.c.l.b16 %v85
    %v234 = vunpack.c.h.b16 %v85
    %v235 = vunpack.c.l.b16 %v86
    %v236 = vunpack.c.h.b16 %v86
    %v237 = vunpack.c.l.b16 %v87
    %v238 = vunpack.c.h.b16 %v87
    %v239 = vunpack.c.l.b16 %v88
    %v240 = vunpack.c.h.b16 %v88
    %v241 = vpack.c.b16 %v233, %v225
    %v242 = vpack.c.b16 %v234, %v226
    %v243 = vpack.c.b16 %v235, %v227
    %v244 = vpack.c.b16 %v236, %v228
    %v245 = vpack.c.b16 %v237, %v229
    %v246 = vpack.c.b16 %v238, %v230
    %v247 = vpack.c.b16 %v239, %v231
    %v248 = vpack.c.b16 %v240, %v232
    %v385 = vunpack.c.l.b16 %v89
    %v386 = vunpack.c.l.b16 %v90
    %v387 = vunpack.c.l.b16 %v91
    %v388 = vunpack.c.l.b16 %v92
    %v389 = vunpack.c.l.b16 %v93
    %v390 = vunpack.c.l.b16 %v94
    %v391 = vunpack.c.l.b16 %v95
    %v392 = vunpack.c.l.b16 %v96
    %v393 = vunpack.c.l.b16 %v97
    %v394 = vunpack.c.l.b16 %v98
    %v395 = vunpack.c.l.b16 %v99
    %v396 = vunpack.c.l.b16 %v100
    %v397 = vunpack.c.l.b16 %v101
    %v398 = vunpack.c.l.b16 %v102
    %v399 = vunpack.c.l.b16 %v103
    %v400 = vunpack.c.l.b16 %v104
    %v401 = vunpack.c.l.b16 %v105
    %v402 = vunpack.c.l.b16 %v106
    %v403 = vunpack.c.l.b16 %v107
    %v404 = vunpack.c.l.b16 %v108
    %v405 = vunpack.c.l.b16 %v109
    %v406 = vunpack.c.l.b16 %v110
    %v407 = vunpack.c.l.b16 %v111
    %v408 = vunpack.c.l.b16 %v112
    %v409 = vunpack.c.l.b16 %v113
    %v410 = vunpack.c.l.b16 %v114
    %v411 = vunpack.c.l.b16 %v115
    %v412 = vunpack.c.l.b16 %v116
    %v413 = vunpack.c.l.b16 %v117
    %v414 = vunpack.c.l.b16 %v118
    %v415 = vunpack.c.l.b16 %v119
    %v416 = vunpack.c.l.b16 %v120
    %v417 = vunpack.c.l.b16 %v121
    %v418 = vunpack.c.l.b16 %v122
    %v419 = vunpack.c.l.b16 %v123
    %v420 = vunpack.c.l.b16 %v124
    %v421 = vunpack.c.l.b16 %v125
    %v422 = vunpack.c.l.b16 %v126
    %v423 = vunpack.c.l.b16 %v127
    %v424 = vunpack.c.l.b16 %v128
    %v425 = vunpack.c.l.b16 %v129
    %v426 = vunpack.c.l.b16 %v130
    %v427 = vunpack.c.l.b16 %v131
    %v428 = vunpack.c.l.b16 %v132
    %v429 = vunpack.c.l.b16 %v133
    %v430 = vunpack.c.l.b16 %v134
    %v431 = vunpack.c.l.b16 %v135
    %v432 = vunpack.c.l.b16 %v136
    %v433 = vunpack.c.l.b16 %v137
    %v434 = vunpack.c.l.b16 %v138
    %v435 = vunpack.c.l.b16 %v139
    %v436 = vunpack.c.l.b16 %v140
    %v437 = vunpack.c.l.b16 %v141
    %v438 = vunpack.c.l.b16 %v142
    %v439 = vunpack.c.l.b16 %v143
    %v440 = vunpack.c.l.b16 %v144
    %v441 = vunpack.c.l.b16 %v145
    %v442 = vunpack.c.l.b16 %v146
    %v443 = vunpack.c.l.b16 %v147
    %v444 = vunpack.c.l.b16 %v148
    %v445 = vunpack.c.l.b16 %v149
    %v446 = vunpack.c.l.b16 %v150
    %v447 = vunpack.c.l.b16 %v151
    %v448 = vunpack.c.l.b16 %v152
    %v449 = vunpack.c.l.b16 %v153
    %v450 = vunpack.c.l.b16 %v154
    %v451 = vunpack.c.l.b16 %v155
    %v452 = vunpack.c.l.b16 %v156
    %v453 = vunpack.c.l.b16 %v157
    %v454 = vunpack.c.l.b16 %v158
    %v455 = vunpack.c.l.b16 %v159
    %v456 = vunpack.c.l.b16 %v160
    %v457 = vunpack.c.l.b16 %v161
    %v458 = vunpack.c.l.b16 %v162
    %v459 = vunpack.c.l.b16 %v163
    %v460 = vunpack.c.l.b16 %v164
    %v461 = vunpack.c.l.b16 %v165
    %v462 = vunpack.c.l.b16 %v166
    %v463 = vunpack.c.l.b16 %v167
    %v464 = vunpack.c.l.b16 %v168
    %v465 = vunpack.c.l.b16 %v169
    %v466 = vunpack.c.l.b16 %v170
    %v467 = vunpack.c.l.b16 %v171
    %v468 = vunpack.c.l.b16 %v172
    %v469 = vunpack.c.l.b16 %v173
    %v470 = vunpack.c.l.b16 %v174
    %v471 = vunpack.c.l.b16 %v175
    %v472 = vunpack.c.l.b16 %v176
    %v473 = vunpack.c.l.b16 %v177
    %v474 = vunpack.c.l.b16 %v178
    %v475 = vunpack.c.l.b16 %v179
    %v476 = vunpack.c.l.b16 %v180
    %v477 = vunpack.c.l.b16 %v181
    %v478 = vunpack.c.l.b16 %v182
    %v479 = vunpack.c.l.b16 %v183
    %v480 = vunpack.c.l.b16 %v184
    %v481 = vunpack.c.l.b16 %v185
    %v482 = vunpack.c.l.b16 %v186
    %v483 = vunpack.c.l.b16 %v187
    %v484 = vunpack.c.l.b16 %v188
    %v485 = vunpack.c.l.b16 %v189
    %v486 = vunpack.c.l.b16 %v190
    %v487 = vunpack.c.l.b16 %v191
    %v488 = vunpack.c.l.b16 %v192
    %v489 = vunpack.c.l.b16 %v193
    %v490 = vunpack.c.l.b16 %v194
    %v491 = vunpack.c.l.b16 %v195
    %v492 = vunpack.c.l.b16 %v196
    %v493 = vunpack.c.l.b16 %v197
    %v494 = vunpack.c.l.b16 %v198
    %v495 = vunpack.c.l.b16 %v199
    %v496 = vunpack.c.l.b16 %v200
    %v497 = vunpack.c.l.b16 %v201
    %v498 = vunpack.c.l.b16 %v202
    %v499 = vunpack.c.l.b16 %v203
    %v500 = vunpack.c.l.b16 %v204
    %v501 = vunpack.c.l.b16 %v205
    %v502 = vunpack.c.l.b16 %v206
    %v503 = vunpack.c.l.b16 %v207
    %v504 = vunpack.c.l.b16 %v208
    %v505 = vunpack.c.l.b16 %v209
    %v506 = vunpack.c.l.b16 %v210
    %v507 = vunpack.c.l.b16 %v211
    %v508 = vunpack.c.l.b16 %v212
    %v509 = vunpack.c.l.b16 %v213
    %v510 = vunpack.c.l.b16 %v214
    %v511 = vunpack.c.l.b16 %v215
    %v512 = vunpack.c.l.b16 %v216
    %v513 = vpack.c.b16 %v386, %v385
    %v514 = vpack.c.b16 %v388, %v387
    %v515 = vpack.c.b16 %v390, %v389
    %v516 = vpack.c.b16 %v392, %v391
    %v517 = vpack.c.b16 %v394, %v393
    %v518 = vpack.c.b16 %v396, %v395
    %v519 = vpack.c.b16 %v398, %v397
    %v520 = vpack.c.b16 %v400, %v399
    %v521 = vpack.c.b16 %v402, %v401
    %v522 = vpack.c.b16 %v404, %v403
    %v523 = vpack.c.b16 %v406, %v405
    %v524 = vpack.c.b16 %v408, %v407
    %v525 = vpack.c.b16 %v410, %v409
    %v526 = vpack.c.b16 %v412, %v411
    %v527 = vpack.c.b16 %v414, %v413
    %v528 = vpack.c.b16 %v416, %v415
    %v529 = vpack.c.b16 %v418, %v417
    %v530 = vpack.c.b16 %v420, %v419
    %v531 = vpack.c.b16 %v422, %v421
    %v532 = vpack.c.b16 %v424, %v423
    %v533 = vpack.c.b16 %v426, %v425
    %v534 = vpack.c.b16 %v428, %v427
    %v535 = vpack.c.b16 %v430, %v429
    %v536 = vpack.c.b16 %v432, %v431
    %v537 = vpack.c.b16 %v434, %v433
    %v538 = vpack.c.b16 %v436, %v435
    %v539 = vpack.c.b16 %v438, %v437
    %v540 = vpack.c.b16 %v440, %v439
    %v541 = vpack.c.b16 %v442, %v441
    %v542 = vpack.c.b16 %v444, %v443
    %v543 = vpack.c.b16 %v446, %v445
    %v544 = vpack.c.b16 %v448, %v447
    %v545 = vpack.c.b16 %v450, %v449
    %v546 = vpack.c.b16 %v452, %v451
    %v547 = vpack.c.b16 %v454, %v453
    %v548 = vpack.c.b16 %v456, %v455
    %v549 = vpack.c.b16 %v458, %v457
    %v550 = vpack.c.b16 %v460, %v459
    %v551 = vpack.c.b16 %v462, %v461
    %v552 = vpack.c.b16 %v464, %v463
    %v553 = vpack.c.b16 %v466, %v465
    %v554 = vpack.c.b16 %v468, %v467
    %v555 = vpack.c.b16 %v470, %v469
    %v556 = vpack.c.b16 %v472, %v471
    %v557 = vpack.c.b16 %v474, %v473
    %v558 = vpack.c.b16 %v476, %v475
    %v559 = vpack.c.b16 %v478, %v477
    %v560 = vpack.c.b16 %v480, %v479
    %v561 = vpack.c.b16 %v482, %v481
    %v562 = vpack.c.b16 %v484, %v483
    %v563 = vpack.c.b16 %v486, %v485
    %v564 = vpack.c.b16 %v488, %v487
    %v565 = vpack.c.b16 %v490, %v489
    %v566 = vpack.c.b16 %v492, %v491
    %v567 = vpack.c.b16 %v494, %v493
    %v568 = vpack.c.b16 %v496, %v495
    %v569 = vpack.c.b16 %v498, %v497
    %v570 = vpack.c.b16 %v500, %v499
    %v571 = vpack.c.b16 %v502, %v501
    %v572 = vpack.c.b16 %v504, %v503
    %v573 = vpack.c.b16 %v506, %v505
    %v574 = vpack.c.b16 %v508, %v507
    %v575 = vpack.c.b16 %v510, %v509
    %v576 = vpack.c.b16 %v512, %v511
    %641 = vmatprep.subr.bf16.mxu0 0
    %642 = vmatpush1.bf16.msra.mxu0 %v520
    %643 = vmatprep.subr.bf16.mxu0 0
    %644 = vmatpush1.bf16.msra.mxu0 %v519
    %645 = vmatprep.subr.bf16.mxu0 0
    %646 = vmatpush1.bf16.msra.mxu0 %v518
    %647 = vmatprep.subr.bf16.mxu0 0
    %648 = vmatpush1.bf16.msra.mxu0 %v517
    %649 = vmatprep.subr.bf16.mxu0 0
    %650 = vmatpush1.bf16.msra.mxu0 %v516
    %651 = vmatprep.subr.bf16.mxu0 0
    %652 = vmatpush1.bf16.msra.mxu0 %v515
    %653 = vmatprep.subr.bf16.mxu0 0
    %654 = vmatpush1.bf16.msra.mxu0 %v514
    %655 = vmatprep.subr.bf16.mxu0 0
    %656 = vmatpush1.bf16.msra.mxu0 %v513
    %657 = vmatprep.subr.bf16.mxu0 0
    %658 = vmatpush2.bf16.msra.mxu0 %v528
    %659 = vmatprep.subr.bf16.mxu0 0
    %660 = vmatpush2.bf16.msra.mxu0 %v527
    %661 = vmatprep.subr.bf16.mxu0 0
    %662 = vmatpush2.bf16.msra.mxu0 %v526
    %663 = vmatprep.subr.bf16.mxu0 0
    %664 = vmatpush2.bf16.msra.mxu0 %v525
    %665 = vmatprep.subr.bf16.mxu0 0
    %666 = vmatpush2.bf16.msra.mxu0 %v524
    %667 = vmatprep.subr.bf16.mxu0 0
    %668 = vmatpush2.bf16.msra.mxu0 %v523
    %669 = vmatprep.subr.bf16.mxu0 0
    %670 = vmatpush2.bf16.msra.mxu0 %v522
    %671 = vmatprep.subr.bf16.mxu0 0
    %672 = vmatpush2.bf16.msra.mxu0 %v521
    %673 = vmatprep.mubr.bf16.mxu0 %v242
    %674 = vmatmul.mubr.bf16.gmra.mxu0 %v241
    %v675 = vpop.f32.mrf.mxu0
    %v676 = vadd.f32 0.0, %v675
    %v677 = vpop.f32.mrf.mxu0
    %v678 = vpop.f32.mrf.mxu0
    %v679 = vadd.f32 0.0, %v678
    %v680 = vpop.f32.mrf.mxu0
    %681 = vdwg.mxu0
    %682 = vmatprep.subr.bf16.mxu0 0
    %683 = vmatpush1.bf16.msra.mxu0 %v536
    %684 = vmatprep.subr.bf16.mxu0 0
    %685 = vmatpush1.bf16.msra.mxu0 %v535
    %686 = vmatprep.subr.bf16.mxu0 0
    %687 = vmatpush1.bf16.msra.mxu0 %v534
    %688 = vmatprep.subr.bf16.mxu0 0
    %689 = vmatpush1.bf16.msra.mxu0 %v533
    %690 = vmatprep.subr.bf16.mxu0 0
    %691 = vmatpush1.bf16.msra.mxu0 %v532
    %692 = vmatprep.subr.bf16.mxu0 0
    %693 = vmatpush1.bf16.msra.mxu0 %v531
    %694 = vmatprep.subr.bf16.mxu0 0
    %695 = vmatpush1.bf16.msra.mxu0 %v530
    %696 = vmatprep.subr.bf16.mxu0 0
    %697 = vmatpush1.bf16.msra.mxu0 %v529
    %698 = vmatprep.subr.bf16.mxu0 0
    %699 = vmatpush2.bf16.msra.mxu0 %v544
    %700 = vmatprep.subr.bf16.mxu0 0
    %701 = vmatpush2.bf16.msra.mxu0 %v543
    %702 = vmatprep.subr.bf16.mxu0 0
    %703 = vmatpush2.bf16.msra.mxu0 %v542
    %704 = vmatprep.subr.bf16.mxu0 0
    %705 = vmatpush2.bf16.msra.mxu0 %v541
    %706 = vmatprep.subr.bf16.mxu0 0
    %707 = vmatpush2.bf16.msra.mxu0 %v540
    %708 = vmatprep.subr.bf16.mxu0 0
    %709 = vmatpush2.bf16.msra.mxu0 %v539
    %710 = vmatprep.subr.bf16.mxu0 0
    %711 = vmatpush2.bf16.msra.mxu0 %v538
    %712 = vmatprep.subr.bf16.mxu0 0
    %713 = vmatpush2.bf16.msra.mxu0 %v537
    %714 = vmatprep.mubr.bf16.mxu0 %v244
    %715 = vmatmul.mubr.bf16.gmra.mxu0 %v243
    %v716 = vpop.f32.mrf.mxu0
    %v717 = vadd.f32 %v676, %v716
    %v718 = vpop.f32.mrf.mxu0
    %v719 = vpop.f32.mrf.mxu0
    %v720 = vadd.f32 %v679, %v719
    %v721 = vpop.f32.mrf.mxu0
    %722 = vdwg.mxu0
    %723 = vmatprep.subr.bf16.mxu0 0
    %724 = vmatpush1.bf16.msra.mxu0 %v552
    %725 = vmatprep.subr.bf16.mxu0 0
    %726 = vmatpush1.bf16.msra.mxu0 %v551
    %727 = vmatprep.subr.bf16.mxu0 0
    %728 = vmatpush1.bf16.msra.mxu0 %v550
    %729 = vmatprep.subr.bf16.mxu0 0
    %730 = vmatpush1.bf16.msra.mxu0 %v549
    %731 = vmatprep.subr.bf16.mxu0 0
    %732 = vmatpush1.bf16.msra.mxu0 %v548
    %733 = vmatprep.subr.bf16.mxu0 0
    %734 = vmatpush1.bf16.msra.mxu0 %v547
    %735 = vmatprep.subr.bf16.mxu0 0
    %736 = vmatpush1.bf16.msra.mxu0 %v546
    %737 = vmatprep.subr.bf16.mxu0 0
    %738 = vmatpush1.bf16.msra.mxu0 %v545
    %739 = vmatprep.subr.bf16.mxu0 0
    %740 = vmatpush2.bf16.msra.mxu0 %v560
    %741 = vmatprep.subr.bf16.mxu0 0
    %742 = vmatpush2.bf16.msra.mxu0 %v559
    %743 = vmatprep.subr.bf16.mxu0 0
    %744 = vmatpush2.bf16.msra.mxu0 %v558
    %745 = vmatprep.subr.bf16.mxu0 0
    %746 = vmatpush2.bf16.msra.mxu0 %v557
    %747 = vmatprep.subr.bf16.mxu0 0
    %748 = vmatpush2.bf16.msra.mxu0 %v556
    %749 = vmatprep.subr.bf16.mxu0 0
    %750 = vmatpush2.bf16.msra.mxu0 %v555
    %751 = vmatprep.subr.bf16.mxu0 0
    %752 = vmatpush2.bf16.msra.mxu0 %v554
    %753 = vmatprep.subr.bf16.mxu0 0
    %754 = vmatpush2.bf16.msra.mxu0 %v553
    %755 = vmatprep.mubr.bf16.mxu0 %v246
    %756 = vmatmul.mubr.bf16.gmra.mxu0 %v245
    %v757 = vpop.f32.mrf.mxu0
    %v758 = vadd.f32 %v717, %v757
    %v759 = vpop.f32.mrf.mxu0
    %v760 = vpop.f32.mrf.mxu0
    %v761 = vadd.f32 %v720, %v760
    %v762 = vpop.f32.mrf.mxu0
    %763 = vdwg.mxu0
    %764 = vmatprep.subr.bf16.mxu0 0
    %765 = vmatpush1.bf16.msra.mxu0 %v568
    %766 = vmatprep.subr.bf16.mxu0 0
    %767 = vmatpush1.bf16.msra.mxu0 %v567
    %768 = vmatprep.subr.bf16.mxu0 0
    %769 = vmatpush1.bf16.msra.mxu0 %v566
    %770 = vmatprep.subr.bf16.mxu0 0
    %771 = vmatpush1.bf16.msra.mxu0 %v565
    %772 = vmatprep.subr.bf16.mxu0 0
    %773 = vmatpush1.bf16.msra.mxu0 %v564
    %774 = vmatprep.subr.bf16.mxu0 0
    %775 = vmatpush1.bf16.msra.mxu0 %v563
    %776 = vmatprep.subr.bf16.mxu0 0
    %777 = vmatpush1.bf16.msra.mxu0 %v562
    %778 = vmatprep.subr.bf16.mxu0 0
    %779 = vmatpush1.bf16.msra.mxu0 %v561
    %780 = vmatprep.subr.bf16.mxu0 0
    %781 = vmatpush2.bf16.msra.mxu0 %v576
    %782 = vmatprep.subr.bf16.mxu0 0
    %783 = vmatpush2.bf16.msra.mxu0 %v575
    %784 = vmatprep.subr.bf16.mxu0 0
    %785 = vmatpush2.bf16.msra.mxu0 %v574
    %786 = vmatprep.subr.bf16.mxu0 0
    %787 = vmatpush2.bf16.msra.mxu0 %v573
    %788 = vmatprep.subr.bf16.mxu0 0
    %789 = vmatpush2.bf16.msra.mxu0 %v572
    %790 = vmatprep.subr.bf16.mxu0 0
    %791 = vmatpush2.bf16.msra.mxu0 %v571
    %792 = vmatprep.subr.bf16.mxu0 0
    %793 = vmatpush2.bf16.msra.mxu0 %v570
    %794 = vmatprep.subr.bf16.mxu0 0
    %795 = vmatpush2.bf16.msra.mxu0 %v569
    %796 = vmatprep.mubr.bf16.mxu0 %v248
    %797 = vmatmul.mubr.bf16.gmra.mxu0 %v247
    %v798 = vpop.f32.mrf.mxu0
    %v799 = vadd.f32 %v758, %v798
    %v800 = vpop.f32.mrf.mxu0
    %v801 = vpop.f32.mrf.mxu0
    %v802 = vadd.f32 %v761, %v801
    %v803 = vpop.f32.mrf.mxu0
    %804 = vdwg.mxu0
    %v805 = vld [vmem:[#allocation5] sm:$0xff]
    %v806 = vld [vmem:[#allocation5 + $0x8] sm:$0xff]
    %v807 = vld [vmem:[#allocation5 + $0x10] sm:$0xff]
    %v808 = vld [vmem:[#allocation5 + $0x18] sm:$0xff]
    %v809 = vld [vmem:[#allocation5 + $0x20] sm:$0xff]
    %v810 = vld [vmem:[#allocation5 + $0x28] sm:$0xff]
    %v811 = vld [vmem:[#allocation5 + $0x30] sm:$0xff]
    %v812 = vld [vmem:[#allocation5 + $0x38] sm:$0xff]
    %v821 = vunpack.c.l.b16 %v805
    %v822 = vunpack.c.h.b16 %v805
    %v823 = vunpack.c.l.b16 %v806
    %v824 = vunpack.c.h.b16 %v806
    %v825 = vunpack.c.l.b16 %v807
    %v826 = vunpack.c.h.b16 %v807
    %v827 = vunpack.c.l.b16 %v808
    %v828 = vunpack.c.h.b16 %v808
    %v829 = vunpack.c.l.b16 %v809
    %v830 = vunpack.c.h.b16 %v809
    %v831 = vunpack.c.l.b16 %v810
    %v832 = vunpack.c.h.b16 %v810
    %v833 = vunpack.c.l.b16 %v811
    %v834 = vunpack.c.h.b16 %v811
    %v835 = vunpack.c.l.b16 %v812
    %v836 = vunpack.c.h.b16 %v812
    %v837 = vpack.c.b16 %v829, %v821
    %v838 = vpack.c.b16 %v830, %v822
    %v839 = vpack.c.b16 %v831, %v823
    %v840 = vpack.c.b16 %v832, %v824
    %v841 = vpack.c.b16 %v833, %v825
    %v842 = vpack.c.b16 %v834, %v826
    %v843 = vpack.c.b16 %v835, %v827
    %v844 = vpack.c.b16 %v836, %v828
    %853 = vmatprep.subr.bf16.mxu0 0
    %854 = vmatpush1.bf16.msra.mxu0 %v520
    %855 = vmatprep.subr.bf16.mxu0 0
    %856 = vmatpush1.bf16.msra.mxu0 %v519
    %857 = vmatprep.subr.bf16.mxu0 0
    %858 = vmatpush1.bf16.msra.mxu0 %v518
    %859 = vmatprep.subr.bf16.mxu0 0
    %860 = vmatpush1.bf16.msra.mxu0 %v517
    %861 = vmatprep.subr.bf16.mxu0 0
    %862 = vmatpush1.bf16.msra.mxu0 %v516
    %863 = vmatprep.subr.bf16.mxu0 0
    %864 = vmatpush1.bf16.msra.mxu0 %v515
    %865 = vmatprep.subr.bf16.mxu0 0
    %866 = vmatpush1.bf16.msra.mxu0 %v514
    %867 = vmatprep.subr.bf16.mxu0 0
    %868 = vmatpush1.bf16.msra.mxu0 %v513
    %869 = vmatprep.subr.bf16.mxu0 0
    %870 = vmatpush2.bf16.msra.mxu0 %v528
    %871 = vmatprep.subr.bf16.mxu0 0
    %872 = vmatpush2.bf16.msra.mxu0 %v527
    %873 = vmatprep.subr.bf16.mxu0 0
    %874 = vmatpush2.bf16.msra.mxu0 %v526
    %875 = vmatprep.subr.bf16.mxu0 0
    %876 = vmatpush2.bf16.msra.mxu0 %v525
    %877 = vmatprep.subr.bf16.mxu0 0
    %878 = vmatpush2.bf16.msra.mxu0 %v524
    %879 = vmatprep.subr.bf16.mxu0 0
    %880 = vmatpush2.bf16.msra.mxu0 %v523
    %881 = vmatprep.subr.bf16.mxu0 0
    %882 = vmatpush2.bf16.msra.mxu0 %v522
    %883 = vmatprep.subr.bf16.mxu0 0
    %884 = vmatpush2.bf16.msra.mxu0 %v521
    %885 = vmatprep.mubr.bf16.mxu0 %v838
    %886 = vmatmul.mubr.bf16.gmra.mxu0 %v837
    %v887 = vpop.f32.mrf.mxu0
    %v888 = vadd.f32 0.0, %v887
    %v889 = vpop.f32.mrf.mxu0
    %v890 = vpop.f32.mrf.mxu0
    %v891 = vadd.f32 0.0, %v890
    %v892 = vpop.f32.mrf.mxu0
    %893 = vdwg.mxu0
    %894 = vmatprep.subr.bf16.mxu0 0
    %895 = vmatpush1.bf16.msra.mxu0 %v536
    %896 = vmatprep.subr.bf16.mxu0 0
    %897 = vmatpush1.bf16.msra.mxu0 %v535
    %898 = vmatprep.subr.bf16.mxu0 0
    %899 = vmatpush1.bf16.msra.mxu0 %v534
    %900 = vmatprep.subr.bf16.mxu0 0
    %901 = vmatpush1.bf16.msra.mxu0 %v533
    %902 = vmatprep.subr.bf16.mxu0 0
    %903 = vmatpush1.bf16.msra.mxu0 %v532
    %904 = vmatprep.subr.bf16.mxu0 0
    %905 = vmatpush1.bf16.msra.mxu0 %v531
    %906 = vmatprep.subr.bf16.mxu0 0
    %907 = vmatpush1.bf16.msra.mxu0 %v530
    %908 = vmatprep.subr.bf16.mxu0 0
    %909 = vmatpush1.bf16.msra.mxu0 %v529
    %910 = vmatprep.subr.bf16.mxu0 0
    %911 = vmatpush2.bf16.msra.mxu0 %v544
    %912 = vmatprep.subr.bf16.mxu0 0
    %913 = vmatpush2.bf16.msra.mxu0 %v543
    %914 = vmatprep.subr.bf16.mxu0 0
    %915 = vmatpush2.bf16.msra.mxu0 %v542
    %916 = vmatprep.subr.bf16.mxu0 0
    %917 = vmatpush2.bf16.msra.mxu0 %v541
    %918 = vmatprep.subr.bf16.mxu0 0
    %919 = vmatpush2.bf16.msra.mxu0 %v540
    %920 = vmatprep.subr.bf16.mxu0 0
    %921 = vmatpush2.bf16.msra.mxu0 %v539
    %922 = vmatprep.subr.bf16.mxu0 0
    %923 = vmatpush2.bf16.msra.mxu0 %v538
    %924 = vmatprep.subr.bf16.mxu0 0
    %925 = vmatpush2.bf16.msra.mxu0 %v537
    %926 = vmatprep.mubr.bf16.mxu0 %v840
    %927 = vmatmul.mubr.bf16.gmra.mxu0 %v839
    %v928 = vpop.f32.mrf.mxu0
    %v929 = vadd.f32 %v888, %v928
    %v930 = vpop.f32.mrf.mxu0
    %v931 = vpop.f32.mrf.mxu0
    %v932 = vadd.f32 %v891, %v931
    %v933 = vpop.f32.mrf.mxu0
    %934 = vdwg.mxu0
    %935 = vmatprep.subr.bf16.mxu0 0
    %936 = vmatpush1.bf16.msra.mxu0 %v552
    %937 = vmatprep.subr.bf16.mxu0 0
    %938 = vmatpush1.bf16.msra.mxu0 %v551
    %939 = vmatprep.subr.bf16.mxu0 0
    %940 = vmatpush1.bf16.msra.mxu0 %v550
    %941 = vmatprep.subr.bf16.mxu0 0
    %942 = vmatpush1.bf16.msra.mxu0 %v549
    %943 = vmatprep.subr.bf16.mxu0 0
    %944 = vmatpush1.bf16.msra.mxu0 %v548
    %945 = vmatprep.subr.bf16.mxu0 0
    %946 = vmatpush1.bf16.msra.mxu0 %v547
    %947 = vmatprep.subr.bf16.mxu0 0
    %948 = vmatpush1.bf16.msra.mxu0 %v546
    %949 = vmatprep.subr.bf16.mxu0 0
    %950 = vmatpush1.bf16.msra.mxu0 %v545
    %951 = vmatprep.subr.bf16.mxu0 0
    %952 = vmatpush2.bf16.msra.mxu0 %v560
    %953 = vmatprep.subr.bf16.mxu0 0
    %954 = vmatpush2.bf16.msra.mxu0 %v559
    %955 = vmatprep.subr.bf16.mxu0 0
    %956 = vmatpush2.bf16.msra.mxu0 %v558
    %957 = vmatprep.subr.bf16.mxu0 0
    %958 = vmatpush2.bf16.msra.mxu0 %v557
    %959 = vmatprep.subr.bf16.mxu0 0
    %960 = vmatpush2.bf16.msra.mxu0 %v556
    %961 = vmatprep.subr.bf16.mxu0 0
    %962 = vmatpush2.bf16.msra.mxu0 %v555
    %963 = vmatprep.subr.bf16.mxu0 0
    %964 = vmatpush2.bf16.msra.mxu0 %v554
    %965 = vmatprep.subr.bf16.mxu0 0
    %966 = vmatpush2.bf16.msra.mxu0 %v553
    %967 = vmatprep.mubr.bf16.mxu0 %v842
    %968 = vmatmul.mubr.bf16.gmra.mxu0 %v841
    %v969 = vpop.f32.mrf.mxu0
    %v970 = vadd.f32 %v929, %v969
    %v971 = vpop.f32.mrf.mxu0
    %v972 = vpop.f32.mrf.mxu0
    %v973 = vadd.f32 %v932, %v972
    %v974 = vpop.f32.mrf.mxu0
    %975 = vdwg.mxu0
    %976 = vmatprep.subr.bf16.mxu0 0
    %977 = vmatpush1.bf16.msra.mxu0 %v568
    %978 = vmatprep.subr.bf16.mxu0 0
    %979 = vmatpush1.bf16.msra.mxu0 %v567
    %980 = vmatprep.subr.bf16.mxu0 0
    %981 = vmatpush1.bf16.msra.mxu0 %v566
    %982 = vmatprep.subr.bf16.mxu0 0
    %983 = vmatpush1.bf16.msra.mxu0 %v565
    %984 = vmatprep.subr.bf16.mxu0 0
    %985 = vmatpush1.bf16.msra.mxu0 %v564
    %986 = vmatprep.subr.bf16.mxu0 0
    %987 = vmatpush1.bf16.msra.mxu0 %v563
    %988 = vmatprep.subr.bf16.mxu0 0
    %989 = vmatpush1.bf16.msra.mxu0 %v562
    %990 = vmatprep.subr.bf16.mxu0 0
    %991 = vmatpush1.bf16.msra.mxu0 %v561
    %992 = vmatprep.subr.bf16.mxu0 0
    %993 = vmatpush2.bf16.msra.mxu0 %v576
    %994 = vmatprep.subr.bf16.mxu0 0
    %995 = vmatpush2.bf16.msra.mxu0 %v575
    %996 = vmatprep.subr.bf16.mxu0 0
    %997 = vmatpush2.bf16.msra.mxu0 %v574
    %998 = vmatprep.subr.bf16.mxu0 0
    %999 = vmatpush2.bf16.msra.mxu0 %v573
    %1000 = vmatprep.subr.bf16.mxu0 0
    %1001 = vmatpush2.bf16.msra.mxu0 %v572
    %1002 = vmatprep.subr.bf16.mxu0 0
    %1003 = vmatpush2.bf16.msra.mxu0 %v571
    %1004 = vmatprep.subr.bf16.mxu0 0
    %1005 = vmatpush2.bf16.msra.mxu0 %v570
    %1006 = vmatprep.subr.bf16.mxu0 0
    %1007 = vmatpush2.bf16.msra.mxu0 %v569
    %1008 = vmatprep.mubr.bf16.mxu0 %v844
    %1009 = vmatmul.mubr.bf16.gmra.mxu0 %v843
    %v1010 = vpop.f32.mrf.mxu0
    %v1011 = vadd.f32 %v970, %v1010
    %v1012 = vpop.f32.mrf.mxu0
    %v1013 = vpop.f32.mrf.mxu0
    %v1014 = vadd.f32 %v973, %v1013
    %v1015 = vpop.f32.mrf.mxu0
    %1016 = vdwg.mxu0
    %1018 = vset.pattern.permute.xlu0 0
    %1019 = vperm.xlu0 %1018, %v79
    %v1020 = vpop.permute.xlu0 %1019
    %1023 = vset.pattern.permute.xlu0 0
    %1024 = vperm.xlu0 %1023, %v80
    %v1025 = vpop.permute.xlu0 %1024
    %v1027 = vmul.f32 %v1020, %v799
    %v1028 = vmul.f32 %v1025, %v802
    %v1029 = vsub.f32 1.0, %v79
    %v1030 = vsub.f32 1.0, %v80
    %1032 = vset.pattern.permute.xlu0 0
    %1033 = vperm.xlu0 %1032, %v1029
    %v1034 = vpop.permute.xlu0 %1033
    %1037 = vset.pattern.permute.xlu0 0
    %1038 = vperm.xlu0 %1037, %v1030
    %v1039 = vpop.permute.xlu0 %1038
    %v1041 = vmul.f32 %v1034, %v1011
    %v1042 = vmul.f32 %v1039, %v1014
    %v1043 = vadd.f32 %v1027, %v1041
    %v1044 = vadd.f32 %v1028, %v1042
    %vm1045 = vcmp.gt.f32.partialorder %v1043, 0.0
    %vm1046 = vcmp.gt.f32.partialorder %v1044, 0.0
    %v1047 = vsel %vm1045, 1, 0
    %v1048 = vsel %vm1046, 1, 0
    %v1049 = vcvt.s32.f32 %v1047
    %v1050 = vcvt.s32.f32 %v1048
    %v1051 = vld [vmem:[#allocation8] sm:$0xff]
    %v1052 = vld [vmem:[#allocation8 + $0x8] sm:$0xff]
    %v1053 = vld [vmem:[#allocation8 + $0x10] sm:$0xff]
    %v1054 = vld [vmem:[#allocation8 + $0x18] sm:$0xff]
    %v1055 = vld [vmem:[#allocation8 + $0x20] sm:$0xff]
    %v1056 = vld [vmem:[#allocation8 + $0x28] sm:$0xff]
    %v1057 = vld [vmem:[#allocation8 + $0x30] sm:$0xff]
    %v1058 = vld [vmem:[#allocation8 + $0x38] sm:$0xff]
    %v1059 = vld [vmem:[#allocation8 + $0x40] sm:$0xff]
    %v1060 = vld [vmem:[#allocation8 + $0x48] sm:$0xff]
    %v1061 = vld [vmem:[#allocation8 + $0x50] sm:$0xff]
    %v1062 = vld [vmem:[#allocation8 + $0x58] sm:$0xff]
    %v1063 = vld [vmem:[#allocation8 + $0x60] sm:$0xff]
    %v1064 = vld [vmem:[#allocation8 + $0x68] sm:$0xff]
    %v1065 = vld [vmem:[#allocation8 + $0x70] sm:$0xff]
    %v1066 = vld [vmem:[#allocation8 + $0x78] sm:$0xff]
    %1067 = vmatprep.subr.mxu0 0.0
    %1068 = vmatpush1.msra.mxu0 %v1066
    %1069 = vmatprep.subr.mxu0 0.0
    %1070 = vmatpush1.msra.mxu0 %v1065
    %1071 = vmatprep.subr.mxu0 0.0
    %1072 = vmatpush1.msra.mxu0 %v1064
    %1073 = vmatprep.subr.mxu0 0.0
    %1074 = vmatpush1.msra.mxu0 %v1063
    %1075 = vmatprep.subr.mxu0 0.0
    %1076 = vmatpush1.msra.mxu0 %v1062
    %1077 = vmatprep.subr.mxu0 0.0
    %1078 = vmatpush1.msra.mxu0 %v1061
    %1079 = vmatprep.subr.mxu0 0.0
    %1080 = vmatpush1.msra.mxu0 %v1060
    %1081 = vmatprep.subr.mxu0 0.0
    %1082 = vmatpush1.msra.mxu0 %v1059
    %1083 = vmatprep.subr.mxu0 0.0
    %1084 = vmatpush1.msra.mxu0 %v1058
    %1085 = vmatprep.subr.mxu0 0.0
    %1086 = vmatpush1.msra.mxu0 %v1057
    %1087 = vmatprep.subr.mxu0 0.0
    %1088 = vmatpush1.msra.mxu0 %v1056
    %1089 = vmatprep.subr.mxu0 0.0
    %1090 = vmatpush1.msra.mxu0 %v1055
    %1091 = vmatprep.subr.mxu0 0.0
    %1092 = vmatpush1.msra.mxu0 %v1054
    %1093 = vmatprep.subr.mxu0 0.0
    %1094 = vmatpush1.msra.mxu0 %v1053
    %1095 = vmatprep.subr.mxu0 0.0
    %1096 = vmatpush1.msra.mxu0 %v1052
    %1097 = vmatprep.subr.mxu0 0.0
    %1098 = vmatpush1.msra.mxu0 %v1051
    %1099 = vmatprep.subr.mxu0 0.0
    %1100 = vmatpush2.msra.mxu0 0.0
    %1101 = vmatprep.subr.mxu0 0.0
    %1102 = vmatpush2.msra.mxu0 0.0
    %1103 = vmatprep.subr.mxu0 0.0
    %1104 = vmatpush2.msra.mxu0 0.0
    %1105 = vmatprep.subr.mxu0 0.0
    %1106 = vmatpush2.msra.mxu0 0.0
    %1107 = vmatprep.subr.mxu0 0.0
    %1108 = vmatpush2.msra.mxu0 0.0
    %1109 = vmatprep.subr.mxu0 0.0
    %1110 = vmatpush2.msra.mxu0 0.0
    %1111 = vmatprep.subr.mxu0 0.0
    %1112 = vmatpush2.msra.mxu0 0.0
    %1113 = vmatprep.subr.mxu0 0.0
    %1114 = vmatpush2.msra.mxu0 0.0
    %1115 = vmatprep.subr.mxu0 0.0
    %1116 = vmatpush2.msra.mxu0 0.0
    %1117 = vmatprep.subr.mxu0 0.0
    %1118 = vmatpush2.msra.mxu0 0.0
    %1119 = vmatprep.subr.mxu0 0.0
    %1120 = vmatpush2.msra.mxu0 0.0
    %1121 = vmatprep.subr.mxu0 0.0
    %1122 = vmatpush2.msra.mxu0 0.0
    %1123 = vmatprep.subr.mxu0 0.0
    %1124 = vmatpush2.msra.mxu0 0.0
    %1125 = vmatprep.subr.mxu0 0.0
    %1126 = vmatpush2.msra.mxu0 0.0
    %1127 = vmatprep.subr.mxu0 0.0
    %1128 = vmatpush2.msra.mxu0 0.0
    %1129 = vmatprep.subr.mxu0 0.0
    %1130 = vmatpush2.msra.mxu0 0.0
    %1131 = vmatprep.mubr.f32.mxu0 0.0
    %1132 = vmatmul.mubr.f32.gmra.mxu0 %v1049
    %v1133 = vpop.f32.mrf.mxu0
    %v1134 = vadd.f32 0.0, %v1133
    %v1135 = vpop.f32.mrf.mxu0
    %1136 = vmatprep.mubr.f32.mxu0 0.0
    %1137 = vmatmul.mubr.f32.gmra.mxu0 %v1050
    %v1138 = vpop.f32.mrf.mxu0
    %v1139 = vadd.f32 0.0, %v1138
    %v1140 = vpop.f32.mrf.mxu0
    %1141 = vdwg.mxu0
    %v1142 = vmul.f32 %v1134, %v1049
    %v1143 = vmul.f32 %v1139, %v1050
    %1144 = vadd.xlane.f32.xlu0 %v1142
    %v1145 = vpop.xlane.xlu0 %1144
    %1146 = vadd.xlane.f32.xlu0 %v1143
    %v1147 = vpop.xlane.xlu0 %1146
    %v1148 = vmax.f32 %v1145, 0.0
    %v1149 = vmax.f32 %v1147, 0.0
    %v1150 = vrsqrt.pop %v1148
    %v1151 = vmul.f32 %v1148, %v1150
    %vm1152 = vcmp.eq.f32.partialorder %v1148, inf
    %v1153 = vsel %vm1152, %v1148, %v1151
    %vm1154 = vcmp.eq.f32.partialorder %v1148, 0.0
    %v1155 = vand.u32 %v1148, 2147483648
    %v1156 = vsel %vm1154, %v1155, %v1153
    %v1157 = vrsqrt.pop %v1149
    %v1158 = vmul.f32 %v1149, %v1157
    %vm1159 = vcmp.eq.f32.partialorder %v1149, inf
    %v1160 = vsel %vm1159, %v1149, %v1158
    %vm1161 = vcmp.eq.f32.partialorder %v1149, 0.0
    %v1162 = vand.u32 %v1149, 2147483648
    %v1163 = vsel %vm1161, %v1162, %v1160
    %v1164 = vsub.f32 %v1156, 1.0
    %v1165 = vsub.f32 %v1163, 1.0
    %v1166 = vmul.f32 %v1164, %v1164
    %v1167 = vmul.f32 %v1165, %v1165
    %v1168 = vlaneseq
    %v1169 = vshrl.u32 %v1168, 7
    %v1170 = vadd.s32 %v1169, 8
    %v1171 = vstv %s77
    %v1172 = vadd.s32 %v1169, %v1171
    %v1173 = vadd.s32 %v1170, %v1171
    %vm1174 = vcmp.lt.s32.totalorder %v1172, 2
    %vm1175 = vcmp.lt.s32.totalorder %v1173, 2
    %v1176 = vsel %vm1174, %v1166, 0.0
    %v1177 = vsel %vm1175, %v1167, 0.0
    %vm1178 = vcmask 7168
    %v1179 = vsel %vm1178, %v1176, 0.0
    %v1180 = vsel %vm1178, %v1177, 0.0
    %v1181 = vadd.f32 %v1179, %v1180
    %1182 = vadd.xlane.f32.xlu0 %v1181
    %v1183 = vpop.xlane.xlu0 %1182
    %v1184 = vrot.slane %v1183, 4
    %v1185 = vadd.f32 %v1183, %v1184
    %v1186 = vrot.slane %v1185, 2
    %v1187 = vadd.f32 %v1185, %v1186
    %v1188 = vrot.slane %v1187, 1
    %v1189 = vadd.f32 %v1187, %v1188
    %s1190 = vtos %v1189
    %v1191 = vstv %s1190
    %1192 = vst [vmem:[#allocation10] sm:$0xff] %v1191
    // Predicated region
    $region38: #{tpu_custom_call.1} parent=1 // pred_check
      _
    $region39: #{tpu_custom_call.1} parent=1 // pred_check_branch
      %1194 = sbr.rel (0) target = $region41
    $region40: #{tpu_custom_call.1} parent=1 // pred_region
      %s1196 = ssub.s32 128, 128
      %1197 = vsyncadd [#allocation4], %s1196
      %s1199 = sshll.u32 [#allocation10], 4
      %s1200 = int_to_ptr.vmem [resolvable:$true] %s1199
      %1202 = dma.vmem_to_hbm [thread:$0]  %s1200, 128, %s5, [#allocation4]
    $region41: #{tpu_custom_call.1} parent=1 // pred_fallthru
      _
    // Predicated region
    $region42: #{tpu_custom_call.1} parent=1 // pred_check
      _
    $region43: #{tpu_custom_call.1} parent=1 // pred_check_branch
      %1204 = sbr.rel (0) target = $region45
    $region44: #{tpu_custom_call.1} parent=1 // pred_region
      %1205 = dma.done [#allocation4], 128
    $region45: #{tpu_custom_call.1} parent=1 // pred_fallthru
      _
    %1206 = vsyncpa [#allocation3], 1
    %1207 = vsyncpa [#allocation6], 1
    %1208 = vsyncpa [#allocation9], 1
    %1209 = vsyncpa [#allocation4], 1

</llo_original>
